<compile_context>
chip_gen: v5e
topology: v5e:2x2
jax: 0.10.0
libtpu: 0.0.40
codegen_flags: <defaults>
</compile_context>

<pallas_src>
import math

import jax
import jax.numpy as jnp
from jax.experimental import pallas as pl
from jax.experimental.pallas import tpu as pltpu


def _round_up(x, m):
    return ((x + m - 1) // m) * m


def _dqn_head_kernel(x_ref, w1_ref, b1_ref, w2_ref, b2_ref, o_ref):
    # One batch tile per grid step: matmul -> bias -> ReLU -> matmul -> bias.
    x = x_ref[...].astype(jnp.bfloat16)                                # (TB, d_in)
    h = jnp.dot(x, w1_ref[...], preferred_element_type=jnp.float32)    # (TB, hid_p) f32
    h = jnp.maximum(h + b1_ref[...], 0.0)                              # bias + ReLU, f32
    y = jnp.dot(h.astype(jnp.bfloat16), w2_ref[...],
                preferred_element_type=jnp.float32)                    # (TB, out) f32
    o_ref[...] = (y + b2_ref[...]).astype(o_ref.dtype)


def prepare_params(w1, b1, w2, b2):
    """One-time param prep (hoisted out of the forward path).

    Pads only the hidden axis to a multiple of 128 (exact-zero padding: padded
    hidden columns produce ReLU(0)=0, which multiply zero w2 rows), and casts
    weights to bf16 (MXU operand fast path).  Input (d_in) and output (out)
    feature dims are NOT padded — blocks equal to the full dim are legal and
    this keeps kernel HBM traffic minimal.
    """
    d_in, hidden = w1.shape
    out = w2.shape[1]
    hid_p = _round_up(hidden, 128)

    w1_p = jnp.zeros((d_in, hid_p), jnp.float32).at[:, :hidden].set(w1)
    b1_p = jnp.zeros((1, hid_p), jnp.float32).at[0, :hidden].set(b1)
    w2_p = jnp.zeros((hid_p, out), jnp.float32).at[:hidden, :].set(w2)
    b2_p = b2.reshape(1, out).astype(jnp.float32)
    return (w1_p.astype(jnp.bfloat16), b1_p, w2_p.astype(jnp.bfloat16), b2_p)


def dqn_head_forward(x_nchw, w1_bf, b1_p, w2_bf, b2_p, *, batch_tile=2048):
    """x_nchw: (B, C, H, W) float32.  Params from prepare_params().

    Returns (B, output_size) float32.
    """
    B = x_nchw.shape[0]
    d_in, hid_p = w1_bf.shape
    out = w2_bf.shape[1]

    # nn.Flatten(-3, -1): flatten the last three dims (C, H, W) -> C*H*W.
    x_flat = x_nchw.reshape(B, -1).astype(jnp.float32)
    assert x_flat.shape[1] == d_in, (x_flat.shape, d_in)

    # Batch tile: split B into the fewest tiles of size <= batch_tile, rounded
    # up to 8 sublanes, so last-tile padding stays small.  Partial last blocks
    # (B % tb != 0) are handled by Pallas: OOB reads are row-independent
    # garbage, OOB writes are dropped.
    num_tiles = max(1, -(-B // batch_tile))
    tb = _round_up(-(-B // num_tiles), 8)
    grid = (pl.cdiv(B, tb),)

    cost = pl.CostEstimate(
        flops=2 * B * (d_in * hid_p + hid_p * out),
        transcendentals=0,
        bytes_accessed=(B * d_in * 4            # x read (f32)
                        + d_in * hid_p * 2      # w1 (bf16)
                        + hid_p * 4             # b1 (f32)
                        + hid_p * out * 2       # w2 (bf16)
                        + out * 4               # b2 (f32)
                        + B * out * 4),         # y write (f32)
    )

    y = pl.pallas_call(
        _dqn_head_kernel,
        out_shape=jax.ShapeDtypeStruct((B, out), jnp.float32),
        grid_spec=pltpu.PrefetchScalarGridSpec(
            num_scalar_prefetch=0,
            grid=grid,
            in_specs=[
                # x: tiled over the batch axis, auto double-buffered; last dim
                # d_in equals the full array dim (no padding, contiguous DMA).
                pl.BlockSpec((tb, d_in), lambda i: (i, 0)),
                # weights/biases: constant index_map -> DMA'd once, resident.
                pl.BlockSpec((d_in, hid_p), lambda i: (0, 0)),
                pl.BlockSpec((1, hid_p), lambda i: (0, 0)),
                pl.BlockSpec((hid_p, out), lambda i: (0, 0)),
                pl.BlockSpec((1, out), lambda i: (0, 0)),
            ],
            # Output unpadded: block last dim == full dim (8).  Masked vst.msk
            # per sublane group is far cheaper than 16x-padded writeback.
            out_specs=pl.BlockSpec((tb, out), lambda i: (i, 0)),
        ),
        compiler_params=pltpu.CompilerParams(
            # Batch tiles are independent -> shard across v7x's two TCs
            # (grid must be >= 2 for this to matter); no-op on v5e/v6e.
            dimension_semantics=("parallel",),
        ),
        cost_estimate=cost,
    )(x_flat, w1_bf, b1_p, w2_bf, b2_p)

    return y


def init_params(key, input_channels, output_size, hidden_size, pixels):
    """Deterministic kaiming_uniform_(nonlinearity='linear') init, zero biases.

    PyTorch kaiming_uniform_ with gain=1: bound = sqrt(3 / fan_in),
    fan_in = in_features for nn.Linear.  Weights stored as (in, out).
    """
    d_in = input_channels * pixels
    k1, k2 = jax.random.split(key)

    bound1 = math.sqrt(3.0 / d_in)
    w1 = jax.random.uniform(k1, (d_in, hidden_size), jnp.float32,
                            minval=-bound1, maxval=bound1)
    b1 = jnp.zeros((hidden_size,), jnp.float32)

    bound2 = math.sqrt(3.0 / hidden_size)
    w2 = jax.random.uniform(k2, (hidden_size, output_size), jnp.float32,
                            minval=-bound2, maxval=bound2)
    b2 = jnp.zeros((output_size,), jnp.float32)
    return w1, b1, w2, b2


if __name__ == "__main__":
    # Small shapes consistent with the module: pixels = H*W = 30,
    # input_channels=4  =>  D_in = 4 * 30 = 120.
    batch = 2
    input_channels = 4
    H, W = 5, 6                 # pixels = 30
    pixels = H * W
    hidden_size = 32
    output_size = 8

    key = jax.random.PRNGKey(0)
    kx, kp = jax.random.split(key)

    x = jax.random.normal(kx, (batch, input_channels, H, W), jnp.float32)
    w1, b1, w2, b2 = init_params(kp, input_channels, output_size,
                                 hidden_size, pixels)

    # One-time param prep (padded hidden axis + bf16 weights).
    params = prepare_params(w1, b1, w2, b2)

    out = dqn_head_forward(x, *params)
    out = jax.block_until_ready(out)
    assert out.shape == (batch, output_size), out.shape

    # Matched-precision (bf16 operands, f32 accumulate) reference — tight check.
    x_flat = x.reshape(batch, -1)
    h_ref = jnp.maximum(
        jnp.dot(x_flat.astype(jnp.bfloat16), w1.astype(jnp.bfloat16),
                preferred_element_type=jnp.float32) + b1, 0.0)
    ref_bf = jnp.dot(h_ref.astype(jnp.bfloat16), w2.astype(jnp.bfloat16),
                     preferred_element_type=jnp.float32) + b2
    assert jnp.allclose(out, ref_bf, atol=1e-3, rtol=1e-3), \
        "mismatch vs matched-precision reference"

    # Full-f32 reference — loose check (bf16 MXU operands vs f32 math).
    ref_f32 = jnp.maximum(x_flat @ w1 + b1, 0.0) @ w2 + b2
    assert jnp.allclose(out, ref_f32, atol=2e-2, rtol=2e-2), \
        "mismatch vs f32 reference"

    print("KERNEL_OK")
</pallas_src>

<mosaic_0001>
module attributes {stable_mosaic.version = 11 : i64} {
  func.func @_dqn_head_kernel(%arg0: i32, %arg1: memref<8x120xf32, #tpu.memory_space<vmem>>, %arg2: memref<120x128xbf16, #tpu.memory_space<vmem>>, %arg3: memref<1x128xf32, #tpu.memory_space<vmem>>, %arg4: memref<128x8xbf16, #tpu.memory_space<vmem>>, %arg5: memref<1x8xf32, #tpu.memory_space<vmem>>, %arg6: memref<8x8xf32, #tpu.memory_space<vmem>>) attributes {dimension_semantics = [#tpu.dimension_semantics<parallel>], iteration_bounds = array<i64: 1>, scalar_prefetch = 0 : i64, scratch_operands = 0 : i64, tpu.core_type = #tpu.core_type<tc>, window_params = [{transform_indices = @transform_0, window_bounds = array<i64: 8, 120>}, {pipeline_mode = #tpu.pipeline_mode<synchronous>, transform_indices = @transform_1, window_bounds = array<i64: 120, 128>}, {pipeline_mode = #tpu.pipeline_mode<synchronous>, transform_indices = @transform_2, window_bounds = array<i64: 1, 128>}, {pipeline_mode = #tpu.pipeline_mode<synchronous>, transform_indices = @transform_3, window_bounds = array<i64: 128, 8>}, {pipeline_mode = #tpu.pipeline_mode<synchronous>, transform_indices = @transform_4, window_bounds = array<i64: 1, 8>}, {transform_indices = @transform_5, window_bounds = array<i64: 8, 8>}]} {
    %c0 = arith.constant 0 : index
    %c0_0 = arith.constant 0 : index
    %0 = vector.load %arg1[%c0, %c0_0] : memref<8x120xf32, #tpu.memory_space<vmem>>, vector<8x120xf32>
    %1 = arith.truncf %0 : vector<8x120xf32> to vector<8x120xbf16>
    %c0_1 = arith.constant 0 : index
    %c0_2 = arith.constant 0 : index
    %2 = vector.load %arg2[%c0_1, %c0_2] : memref<120x128xbf16, #tpu.memory_space<vmem>>, vector<120x128xbf16>
    %cst = arith.constant dense<0.000000e+00> : vector<8x128xf32>
    %3 = tpu.matmul %1, %2, %cst {dimension_numbers = #tpu.dot_dimension_numbers<[1], [0], [0], [1], [0, 0, 1, 1], [], []>} : vector<8x120xbf16>, vector<120x128xbf16>, vector<8x128xf32> -> vector<8x128xf32>
    %c0_3 = arith.constant 0 : index
    %c0_4 = arith.constant 0 : index
    %4 = vector.load %arg3[%c0_3, %c0_4] : memref<1x128xf32, #tpu.memory_space<vmem>>, vector<1x128xf32>
    %5 = vector.broadcast %4 : vector<1x128xf32> to vector<8x128xf32>
    %6 = arith.addf %3, %5 : vector<8x128xf32>
    %cst_5 = arith.constant 0.000000e+00 : f32
    %7 = vector.broadcast %cst_5 : f32 to vector<8x128xf32>
    %8 = arith.maximumf %6, %7 : vector<8x128xf32>
    %9 = arith.truncf %8 : vector<8x128xf32> to vector<8x128xbf16>
    %c0_6 = arith.constant 0 : index
    %c0_7 = arith.constant 0 : index
    %10 = vector.load %arg4[%c0_6, %c0_7] : memref<128x8xbf16, #tpu.memory_space<vmem>>, vector<128x8xbf16>
    %cst_8 = arith.constant dense<0.000000e+00> : vector<8x8xf32>
    %11 = tpu.matmul %9, %10, %cst_8 {dimension_numbers = #tpu.dot_dimension_numbers<[1], [0], [0], [1], [0, 0, 1, 1], [], []>} : vector<8x128xbf16>, vector<128x8xbf16>, vector<8x8xf32> -> vector<8x8xf32>
    %c0_9 = arith.constant 0 : index
    %c0_10 = arith.constant 0 : index
    %12 = vector.load %arg5[%c0_9, %c0_10] : memref<1x8xf32, #tpu.memory_space<vmem>>, vector<1x8xf32>
    %13 = vector.broadcast %12 : vector<1x8xf32> to vector<8x8xf32>
    %14 = arith.addf %11, %13 : vector<8x8xf32>
    %c0_11 = arith.constant 0 : index
    %c0_12 = arith.constant 0 : index
    %15 = vector.load %arg6[%c0_11, %c0_12] : memref<8x8xf32, #tpu.memory_space<vmem>>, vector<8x8xf32>
    tpu.vector_store %arg6[%c0_11, %c0_12], %14 {strides = array<i32>} : memref<8x8xf32, #tpu.memory_space<vmem>>, vector<8x8xf32>,
    return
  }
  func.func @transform_0(%arg0: i32) -> (i32, i32) {
    %c0_i32 = arith.constant 0 : i32
    %c0_i32_0 = arith.constant 0 : i32
    return %arg0, %c0_i32 : i32, i32
  }
  func.func @transform_1(%arg0: i32) -> (i32, i32) {
    %c0_i32 = arith.constant 0 : i32
    %c0_i32_0 = arith.constant 0 : i32
    %c0_i32_1 = arith.constant 0 : i32
    return %c0_i32, %c0_i32_0 : i32, i32
  }
  func.func @transform_2(%arg0: i32) -> (i32, i32) {
    %c0_i32 = arith.constant 0 : i32
    %c0_i32_0 = arith.constant 0 : i32
    %c0_i32_1 = arith.constant 0 : i32
    return %c0_i32, %c0_i32_0 : i32, i32
  }
  func.func @transform_3(%arg0: i32) -> (i32, i32) {
    %c0_i32 = arith.constant 0 : i32
    %c0_i32_0 = arith.constant 0 : i32
    %c0_i32_1 = arith.constant 0 : i32
    return %c0_i32, %c0_i32_0 : i32, i32
  }
  func.func @transform_4(%arg0: i32) -> (i32, i32) {
    %c0_i32 = arith.constant 0 : i32
    %c0_i32_0 = arith.constant 0 : i32
    %c0_i32_1 = arith.constant 0 : i32
    return %c0_i32, %c0_i32_0 : i32, i32
  }
  func.func @transform_5(%arg0: i32) -> (i32, i32) {
    %c0_i32 = arith.constant 0 : i32
    %c0_i32_0 = arith.constant 0 : i32
    return %arg0, %c0_i32 : i32, i32
  }
}

</mosaic_0001>

<llo_original>
// kernel: tpu_custom_call.1
$region0: #{tpu_custom_call.1}
  #allocation0 [shape = 'u32[]', space=smem, size = 0x4, offset = 0x4, fixed_abs, tag = 'smem constant byte address 0x4 - core index']
  #allocation1 [shape = 'u32[72,128]{1,0:T(1,128)}', space=vmem, size = 0x9000, scoped, tag = 'internal scratch']
  %s0 = inlined_call_operand.vmem [shape: f32[2,120], index: 0, kind: input, shape index: {}]
  %s1 = inlined_call_operand.vmem [shape: bf16[120,128], index: 1, kind: input, shape index: {}]
  %s2 = inlined_call_operand.vmem [shape: f32[1,128], index: 2, kind: input, shape index: {}]
  %s3 = inlined_call_operand.vmem [shape: bf16[128,8], index: 3, kind: input, shape index: {}]
  %s4 = inlined_call_operand.vmem [shape: f32[1,8], index: 4, kind: input, shape index: {}]
  %s5 = inlined_call_operand.hbm [shape: f32[2,8], index: 5, kind: output, shape index: {}]
  %s6 = sld [smem:[#allocation0]]
  $region30: #{tpu_custom_call.1} parent=0
    _
  %s8 = ssub.s32 1, %s6
  %s9 = scalar_select 0, %s8, %s6
  $region1: #{tpu_custom_call.1} parent=0
    #allocation2 [shape = 'u8[4096]{0}', space=vmem, size = 0x1000, scoped, tag = 'output window, operand 0, single buffered']
    #allocation3 [shape = 's32[1]{0}', space=sflag, size = 0x4, scoped, tag = 'scoped memory for tpu_custom_call.1']
    %10 = vsyncpa [#allocation3], 0
    // Predicated region
    $region2: #{tpu_custom_call.1} parent=1 // pred_check
      _
    $region3: #{tpu_custom_call.1} parent=1 // pred_check_branch
      %12 = sbr.rel (0) target = $region5
    $region4: #{tpu_custom_call.1} parent=1 // pred_region
      _
    $region5: #{tpu_custom_call.1} parent=1 // pred_fallthru
      _
    // Predicated region
    $region6: #{tpu_custom_call.1} parent=1 // pred_check
      _
    $region7: #{tpu_custom_call.1} parent=1 // pred_check_branch
      %14 = sbr.rel (0) target = $region9
    $region8: #{tpu_custom_call.1} parent=1 // pred_region
      _
    $region9: #{tpu_custom_call.1} parent=1 // pred_fallthru
      _
    // Predicated region
    $region10: #{tpu_custom_call.1} parent=1 // pred_check
      _
    $region11: #{tpu_custom_call.1} parent=1 // pred_check_branch
      %16 = sbr.rel (0) target = $region13
    $region12: #{tpu_custom_call.1} parent=1 // pred_region
      _
    $region13: #{tpu_custom_call.1} parent=1 // pred_fallthru
      _
    // Predicated region
    $region14: #{tpu_custom_call.1} parent=1 // pred_check
      _
    $region15: #{tpu_custom_call.1} parent=1 // pred_check_branch
      %18 = sbr.rel (0) target = $region17
    $region16: #{tpu_custom_call.1} parent=1 // pred_region
      _
    $region17: #{tpu_custom_call.1} parent=1 // pred_fallthru
      _
    // Predicated region
    $region18: #{tpu_custom_call.1} parent=1 // pred_check
      _
    $region19: #{tpu_custom_call.1} parent=1 // pred_check_branch
      %20 = sbr.rel (0) target = $region21
    $region20: #{tpu_custom_call.1} parent=1 // pred_region
      _
    $region21: #{tpu_custom_call.1} parent=1 // pred_fallthru
      _
    %v21 = vld [vmem:[%s0] sm:$0xff]
    %v22 = vpack.c.bf16 %v21, %v21
    %v23 = vld [vmem:[%s1] sm:$0xf]
    %v24 = vld [vmem:[%s1 + $0x4] sm:$0xf]
    %v25 = vld [vmem:[%s1 + $0x8] sm:$0xf]
    %v26 = vld [vmem:[%s1 + $0xc] sm:$0xf]
    %v27 = vld [vmem:[%s1 + $0x10] sm:$0xf]
    %v28 = vld [vmem:[%s1 + $0x14] sm:$0xf]
    %v29 = vld [vmem:[%s1 + $0x18] sm:$0xf]
    %v30 = vld [vmem:[%s1 + $0x1c] sm:$0xf]
    %v31 = vld [vmem:[%s1 + $0x20] sm:$0xf]
    %v32 = vld [vmem:[%s1 + $0x24] sm:$0xf]
    %v33 = vld [vmem:[%s1 + $0x28] sm:$0xf]
    %v34 = vld [vmem:[%s1 + $0x2c] sm:$0xf]
    %v35 = vld [vmem:[%s1 + $0x30] sm:$0xf]
    %v36 = vld [vmem:[%s1 + $0x34] sm:$0xf]
    %v37 = vld [vmem:[%s1 + $0x38] sm:$0xf]
    %v38 = vld [vmem:[%s2] sm:$0x1]
    %v40 = vperm.slane %v38, 0
    %v57 = vunpack.c.l.b16 %v23
    %v58 = vunpack.c.l.b16 %v24
    %v59 = vunpack.c.l.b16 %v25
    %v60 = vunpack.c.l.b16 %v26
    %v61 = vunpack.c.l.b16 %v27
    %v62 = vunpack.c.l.b16 %v28
    %v63 = vunpack.c.l.b16 %v29
    %v64 = vunpack.c.l.b16 %v30
    %v65 = vunpack.c.l.b16 %v31
    %v66 = vunpack.c.l.b16 %v32
    %v67 = vunpack.c.l.b16 %v33
    %v68 = vunpack.c.l.b16 %v34
    %v69 = vunpack.c.l.b16 %v35
    %v70 = vunpack.c.l.b16 %v36
    %v71 = vunpack.c.l.b16 %v37
    %v72 = vpack.c.b16 %v58, %v57
    %v73 = vpack.c.b16 %v60, %v59
    %v74 = vpack.c.b16 %v62, %v61
    %v75 = vpack.c.b16 %v64, %v63
    %v76 = vpack.c.b16 %v66, %v65
    %v77 = vpack.c.b16 %v68, %v67
    %v78 = vpack.c.b16 %v70, %v69
    %v79 = vpack.c.b16 %v71, %v71
    %vm87 = vcmask 982016
    %v89 = vsel %vm87, %v22, 0
    %vm91 = vcmask 1043456
    %v93 = vsel %vm91, %v79, 0
    %95 = vmatpush.bf16.msra.mxu0 %v93
    %96 = vmatpush.bf16.msra.mxu0 %v78
    %97 = vmatpush.bf16.msra.mxu0 %v77
    %98 = vmatpush.bf16.msra.mxu0 %v76
    %99 = vmatpush.bf16.msra.mxu0 %v75
    %100 = vmatpush.bf16.msra.mxu0 %v74
    %101 = vmatpush.bf16.msra.mxu0 %v73
    %102 = vmatpush.bf16.msra.mxu0 %v72
    %103 = vmatmul.bf16.gmra.mxu0 %v89
    %v104 = vpop.f32.mrf.mxu0
    %v105 = vadd.f32 %v40, %v104
    %v106 = vpop.f32.mrf.mxu0
    %107 = vdwg.mxu0
    %v108 = vmax.f32 %v105, 0.0
    %v109 = vpack.c.bf16 %v108, %v108
    %v110 = vld [vmem:[%s3] sm:$0xf]
    %v111 = vld [vmem:[%s3 + $0x4] sm:$0xf]
    %v112 = vld [vmem:[%s3 + $0x8] sm:$0xf]
    %v113 = vld [vmem:[%s3 + $0xc] sm:$0xf]
    %v114 = vld [vmem:[%s3 + $0x10] sm:$0xf]
    %v115 = vld [vmem:[%s3 + $0x14] sm:$0xf]
    %v116 = vld [vmem:[%s3 + $0x18] sm:$0xf]
    %v117 = vld [vmem:[%s3 + $0x1c] sm:$0xf]
    %v118 = vld [vmem:[%s3 + $0x20] sm:$0xf]
    %v119 = vld [vmem:[%s3 + $0x24] sm:$0xf]
    %v120 = vld [vmem:[%s3 + $0x28] sm:$0xf]
    %v121 = vld [vmem:[%s3 + $0x2c] sm:$0xf]
    %v122 = vld [vmem:[%s3 + $0x30] sm:$0xf]
    %v123 = vld [vmem:[%s3 + $0x34] sm:$0xf]
    %v124 = vld [vmem:[%s3 + $0x38] sm:$0xf]
    %v125 = vld [vmem:[%s3 + $0x3c] sm:$0xf]
    %v126 = vld [vmem:[%s4] sm:$0x1]
    %v128 = vperm.slane %v126, 0
    %v146 = vunpack.c.l.b16 %v110
    %v147 = vunpack.c.l.b16 %v111
    %v148 = vunpack.c.l.b16 %v112
    %v149 = vunpack.c.l.b16 %v113
    %v150 = vunpack.c.l.b16 %v114
    %v151 = vunpack.c.l.b16 %v115
    %v152 = vunpack.c.l.b16 %v116
    %v153 = vunpack.c.l.b16 %v117
    %v154 = vunpack.c.l.b16 %v118
    %v155 = vunpack.c.l.b16 %v119
    %v156 = vunpack.c.l.b16 %v120
    %v157 = vunpack.c.l.b16 %v121
    %v158 = vunpack.c.l.b16 %v122
    %v159 = vunpack.c.l.b16 %v123
    %v160 = vunpack.c.l.b16 %v124
    %v161 = vunpack.c.l.b16 %v125
    %v162 = vpack.c.b16 %v147, %v146
    %v163 = vpack.c.b16 %v149, %v148
    %v164 = vpack.c.b16 %v151, %v150
    %v165 = vpack.c.b16 %v153, %v152
    %v166 = vpack.c.b16 %v155, %v154
    %v167 = vpack.c.b16 %v157, %v156
    %v168 = vpack.c.b16 %v159, %v158
    %v169 = vpack.c.b16 %v161, %v160
    %178 = vmatpush.bf16.msra.mxu0 %v169
    %179 = vmatpush.bf16.msra.mxu0 %v168
    %180 = vmatpush.bf16.msra.mxu0 %v167
    %181 = vmatpush.bf16.msra.mxu0 %v166
    %182 = vmatpush.bf16.msra.mxu0 %v165
    %183 = vmatpush.bf16.msra.mxu0 %v164
    %184 = vmatpush.bf16.msra.mxu0 %v163
    %185 = vmatpush.bf16.msra.mxu0 %v162
    %186 = vmatmul.bf16.gmra.mxu0 %v109
    %v187 = vpop.f32.mrf.mxu0
    %v188 = vadd.f32 %v128, %v187
    %v189 = vpop.f32.mrf.mxu0
    %190 = vdwg.mxu0
    %vm191 = vcmask 64512
    %192 = vst.msk [vmem:[#allocation2] sm:$0xff] %vm191, %v188
    // Predicated region
    $region22: #{tpu_custom_call.1} parent=1 // pred_check
      _
    $region23: #{tpu_custom_call.1} parent=1 // pred_check_branch
      %194 = sbr.rel (0) target = $region25
    $region24: #{tpu_custom_call.1} parent=1 // pred_region
      %196 = vsyncadd [#allocation3], 96
      %s197 = sshll.u32 [#allocation2], 4
      %s198 = int_to_ptr.vmem [resolvable:$true] %s197
      %s199 = sshll.u32 %s5, 4
      %s200 = int_to_ptr.hbm [resolvable:$true] %s199
      %205 = dma.vmem_to_hbm [thread:$0]  %s198, 32, %s200, [#allocation3], 32, 32, 2
    $region25: #{tpu_custom_call.1} parent=1 // pred_fallthru
      _
    // Predicated region
    $region26: #{tpu_custom_call.1} parent=1 // pred_check
      _
    $region27: #{tpu_custom_call.1} parent=1 // pred_check_branch
      %207 = sbr.rel (0) target = $region29
    $region28: #{tpu_custom_call.1} parent=1 // pred_region
      %209 = dma.done [#allocation3], 128
    $region29: #{tpu_custom_call.1} parent=1 // pred_fallthru
      _
    %210 = vsyncpa [#allocation3], 1

</llo_original>
